<compile_context>
chip_gen: v5e
topology: v5e:2x2
jax: 0.10.0
libtpu: 0.0.40
codegen_flags: <defaults>
</compile_context>

<pallas_src>
import functools

import jax
import jax.numpy as jnp
from jax.experimental import pallas as pl
from jax.experimental.pallas import tpu as pltpu


def _inception_kernel(x_ref, w_ref, b_ref, o_ref, *, ktaps, stride, w_out, mult):
    # x_ref: (1, stride, Wq, L)   stride-phase view of one input channel's rows
    # w_ref: (1, mult, 1, ktaps)  combined (mean-folded) taps per output channel
    # b_ref: (1, mult, 1, 1)      combined (mean-folded) bias per output channel
    # o_ref: (1, mult, w_out, L)
    wv = w_ref[...]
    bv = b_ref[...]
    n_phase = min(stride, ktaps)                      # only phases actually used
    phases = [x_ref[0, p] for p in range(n_phase)]    # each (Wq, L), loaded once
    for j in range(mult):
        acc = jnp.zeros(o_ref.shape[2:], jnp.float32)
        for d in range(ktaps):
            p, m = d % stride, d // stride
            acc = acc + phases[p][m:m + w_out, :] * wv[0, j, :, d:d + 1]
        o_ref[0, j] = (acc + bv[0, j]).astype(o_ref.dtype)


def inception_block(x, weights, biases, *, reduction=2, lane_tile=None):
    """x: (N, C_in, H, W) f32.  weights[i]: (C_out, 1, 1, 2i+1).  biases[i]: (C_out,)."""
    N, C_in, H, W = x.shape
    nk = len(weights)
    C_out = weights[0].shape[0]
    assert C_out % C_in == 0, "grouped conv (groups=in_channels) needs C_out % C_in == 0"
    mult = C_out // C_in
    s = int(reduction)
    pm = nk - 1                          # widest per-conv padding
    K = 2 * nk - 1                       # unified centered tap count
    W_out = (W - 1) // s + 1
    # Phase-split width: kernel reads q in [0, W_out + (K-1)//s); right pad >= 0.
    Wq = max(-(-(W + pm) // s), W_out + (K - 1) // s)
    pad_right = Wq * s - W - pm

    # Combine the nk convolutions into a single K-tap filter; fold in the 1/nk mean.
    w_comb = jnp.zeros((C_out, K), jnp.float32)
    b_comb = jnp.zeros((C_out,), jnp.float32)
    for i in range(nk):
        w_comb = w_comb.at[:, pm - i:pm + i + 1].add(weights[i][:, 0, 0, :].astype(jnp.float32))
        b_comb = b_comb + biases[i].astype(jnp.float32)
    w_comb = w_comb * (1.0 / nk)
    b_comb = b_comb * (1.0 / nk)
    w_arr = w_comb.reshape(C_in, mult, 1, K)      # c_out = c_in * mult + j
    b_arr = b_comb.reshape(C_in, mult, 1, 1)

    # Lane-dense internal layout: rows = N*H on lanes, phase-split width on sublanes.
    NH = N * H
    if lane_tile is None:
        # keep the f32 accumulator (w_out x lane_tile) modest so it stays in vregs
        budget = min(1024, max(128, (16384 // max(W_out, 1)) // 128 * 128))
        lane_tile = min(budget, -(-NH // 128) * 128)
    lane_tile = max(128, (lane_tile // 128) * 128)
    NHp = -(-NH // lane_tile) * lane_tile

    # (N, C_in, H, W) -> pad W -> (C_in, s, Wq, N*H): one fused pad+reshape+transpose
    # on the UN-replicated tensor (the phase split rides along for free).
    x_pad = jnp.pad(x, ((0, 0), (0, 0), (0, 0), (pm, pad_right)))          # width = Wq*s
    x_t = jnp.transpose(x_pad.reshape(N, C_in, H, Wq, s), (1, 4, 3, 0, 2))
    x_t = x_t.reshape(C_in, s, Wq, NH)
    if NHp != NH:
        x_t = jnp.pad(x_t, ((0, 0), (0, 0), (0, 0), (0, NHp - NH)))

    kernel = functools.partial(_inception_kernel, ktaps=K, stride=s,
                               w_out=W_out, mult=mult)
    out_t = pl.pallas_call(
        kernel,
        out_shape=jax.ShapeDtypeStruct((C_in, mult, W_out, NHp), x.dtype),
        grid_spec=pltpu.PrefetchScalarGridSpec(
            num_scalar_prefetch=0,
            grid=(C_in, NHp // lane_tile),
            in_specs=[
                pl.BlockSpec((1, s, Wq, lane_tile), lambda c, r: (c, 0, 0, r)),
                pl.BlockSpec((1, mult, 1, K), lambda c, r: (c, 0, 0, 0)),
                pl.BlockSpec((1, mult, 1, 1), lambda c, r: (c, 0, 0, 0)),
            ],
            out_specs=pl.BlockSpec((1, mult, W_out, lane_tile), lambda c, r: (c, 0, 0, r)),
        ),
        compiler_params=pltpu.CompilerParams(
            dimension_semantics=("parallel", "parallel")),
    )(x_t, w_arr, b_arr)

    out = out_t[:, :, :, :NH].reshape(C_out, W_out, N, H)
    return jnp.transpose(out, (2, 0, 3, 1))        # (N, C_out, H, W_out)


def init_params(key, in_channels, out_channels, num_kernels):
    """Deterministic kaiming_normal_(fan_out, relu) weights, zero biases (as in __init__)."""
    weights, biases = [], []
    for i in range(num_kernels):
        key, sub = jax.random.split(key)
        kw = 2 * i + 1
        fan_out = out_channels * kw
        std = (2.0 / fan_out) ** 0.5
        w = jax.random.normal(sub, (out_channels, 1, 1, kw), jnp.float32) * std
        weights.append(w)
        biases.append(jnp.zeros((out_channels,), jnp.float32))
    return weights, biases


def inception_ref(x, weights, biases, reduction):
    """Pure-JAX reference matching the PyTorch forward."""
    C_in = x.shape[1]
    outs = []
    for i in range(len(weights)):
        y = jax.lax.conv_general_dilated(
            x, weights[i],
            window_strides=(1, reduction),
            padding=((0, 0), (i, i)),
            dimension_numbers=("NCHW", "OIHW", "NCHW"),
            feature_group_count=C_in,
            precision=jax.lax.Precision.HIGHEST)
        outs.append(y + biases[i][None, :, None, None])
    return jnp.mean(jnp.stack(outs, axis=-1), axis=-1)


if __name__ == "__main__":
    key = jax.random.PRNGKey(0)
    N, C_in, H, W = 2, 4, 16, 16
    C_out = 8
    num_kernels = 3
    reduction = 2

    kx, kp, kb = jax.random.split(key, 3)
    x = jax.random.normal(kx, (N, C_in, H, W), jnp.float32)
    weights, _ = init_params(kp, C_in, C_out, num_kernels)
    # nonzero biases so the bias path is actually exercised (module default init is 0)
    biases = [0.1 * jax.random.normal(jax.random.fold_in(kb, i), (C_out,), jnp.float32)
              for i in range(num_kernels)]

    fn = jax.jit(functools.partial(inception_block, reduction=reduction))
    out = jax.block_until_ready(fn(x, weights, biases))

    ref = inception_ref(x, weights, biases, reduction)
    assert out.shape == ref.shape, (out.shape, ref.shape)
    max_err = float(jnp.max(jnp.abs(out - ref)))
    if not bool(jnp.allclose(out, ref, atol=1e-4, rtol=1e-4)):
        raise AssertionError(f"Pallas kernel mismatch vs reference, max abs err = {max_err:e}")
    print("KERNEL_OK")
</pallas_src>

<mosaic_0001>
module attributes {stable_mosaic.version = 11 : i64} {
  func.func @_inception_kernel(%arg0: i32, %arg1: i32, %arg2: memref<1x2x10x128xf32, #tpu.memory_space<vmem>>, %arg3: memref<1x2x1x5xf32, #tpu.memory_space<vmem>>, %arg4: memref<1x2x1x1xf32, #tpu.memory_space<vmem>>, %arg5: memref<1x2x8x128xf32, #tpu.memory_space<vmem>>) attributes {dimension_semantics = [#tpu.dimension_semantics<parallel>, #tpu.dimension_semantics<parallel>], iteration_bounds = array<i64: 4, 1>, scalar_prefetch = 0 : i64, scratch_operands = 0 : i64, tpu.core_type = #tpu.core_type<tc>, window_params = [{transform_indices = @transform_0, window_bounds = array<i64: 1, 2, 10, 128>}, {transform_indices = @transform_1, window_bounds = array<i64: 1, 2, 1, 5>}, {transform_indices = @transform_2, window_bounds = array<i64: 1, 2, 1, 1>}, {transform_indices = @transform_3, window_bounds = array<i64: 1, 2, 8, 128>}]} {
    %c0 = arith.constant 0 : index
    %c0_0 = arith.constant 0 : index
    %c0_1 = arith.constant 0 : index
    %c0_2 = arith.constant 0 : index
    %0 = vector.load %arg3[%c0, %c0_0, %c0_1, %c0_2] : memref<1x2x1x5xf32, #tpu.memory_space<vmem>>, vector<1x2x1x5xf32>
    %c0_3 = arith.constant 0 : index
    %c0_4 = arith.constant 0 : index
    %c0_5 = arith.constant 0 : index
    %c0_6 = arith.constant 0 : index
    %1 = vector.load %arg4[%c0_3, %c0_4, %c0_5, %c0_6] : memref<1x2x1x1xf32, #tpu.memory_space<vmem>>, vector<1x2x1x1xf32>
    %c0_7 = arith.constant 0 : index
    %c0_8 = arith.constant 0 : index
    %c0_9 = arith.constant 0 : index
    %c0_10 = arith.constant 0 : index
    %2 = vector.load %arg2[%c0_7, %c0_8, %c0_9, %c0_10] : memref<1x2x10x128xf32, #tpu.memory_space<vmem>>, vector<1x1x10x128xf32>
    %3 = vector.shape_cast %2 : vector<1x1x10x128xf32> to vector<10x128xf32>
    %c0_11 = arith.constant 0 : index
    %c1 = arith.constant 1 : index
    %c0_12 = arith.constant 0 : index
    %c0_13 = arith.constant 0 : index
    %4 = vector.load %arg2[%c0_11, %c1, %c0_12, %c0_13] : memref<1x2x10x128xf32, #tpu.memory_space<vmem>>, vector<1x1x10x128xf32>
    %5 = vector.shape_cast %4 : vector<1x1x10x128xf32> to vector<10x128xf32>
    %cst = arith.constant 0.000000e+00 : f32
    %6 = vector.broadcast %cst : f32 to vector<8x128xf32>
    %7 = vector.extract_strided_slice %3 {offsets = [0, 0], sizes = [8, 128], strides = [1, 1]} : vector<10x128xf32> to vector<8x128xf32>
    %8 = vector.extract_strided_slice %0 {offsets = [0, 0, 0, 0], sizes = [1, 1, 1, 1], strides = [1, 1, 1, 1]} : vector<1x2x1x5xf32> to vector<1x1x1x1xf32>
    %9 = vector.shape_cast %8 : vector<1x1x1x1xf32> to vector<1x1xf32>
    %10 = vector.broadcast %9 : vector<1x1xf32> to vector<8x128xf32>
    %11 = arith.mulf %7, %10 : vector<8x128xf32>
    %12 = arith.addf %6, %11 : vector<8x128xf32>
    %13 = vector.extract_strided_slice %5 {offsets = [0, 0], sizes = [8, 128], strides = [1, 1]} : vector<10x128xf32> to vector<8x128xf32>
    %14 = vector.extract_strided_slice %0 {offsets = [0, 0, 0, 1], sizes = [1, 1, 1, 1], strides = [1, 1, 1, 1]} : vector<1x2x1x5xf32> to vector<1x1x1x1xf32>
    %15 = vector.shape_cast %14 : vector<1x1x1x1xf32> to vector<1x1xf32>
    %16 = vector.broadcast %15 : vector<1x1xf32> to vector<8x128xf32>
    %17 = arith.mulf %13, %16 : vector<8x128xf32>
    %18 = arith.addf %12, %17 : vector<8x128xf32>
    %19 = vector.extract_strided_slice %3 {offsets = [1, 0], sizes = [8, 128], strides = [1, 1]} : vector<10x128xf32> to vector<8x128xf32>
    %20 = vector.extract_strided_slice %0 {offsets = [0, 0, 0, 2], sizes = [1, 1, 1, 1], strides = [1, 1, 1, 1]} : vector<1x2x1x5xf32> to vector<1x1x1x1xf32>
    %21 = vector.shape_cast %20 : vector<1x1x1x1xf32> to vector<1x1xf32>
    %22 = vector.broadcast %21 : vector<1x1xf32> to vector<8x128xf32>
    %23 = arith.mulf %19, %22 : vector<8x128xf32>
    %24 = arith.addf %18, %23 : vector<8x128xf32>
    %25 = vector.extract_strided_slice %5 {offsets = [1, 0], sizes = [8, 128], strides = [1, 1]} : vector<10x128xf32> to vector<8x128xf32>
    %26 = vector.extract_strided_slice %0 {offsets = [0, 0, 0, 3], sizes = [1, 1, 1, 1], strides = [1, 1, 1, 1]} : vector<1x2x1x5xf32> to vector<1x1x1x1xf32>
    %27 = vector.shape_cast %26 : vector<1x1x1x1xf32> to vector<1x1xf32>
    %28 = vector.broadcast %27 : vector<1x1xf32> to vector<8x128xf32>
    %29 = arith.mulf %25, %28 : vector<8x128xf32>
    %30 = arith.addf %24, %29 : vector<8x128xf32>
    %31 = vector.extract_strided_slice %3 {offsets = [2, 0], sizes = [8, 128], strides = [1, 1]} : vector<10x128xf32> to vector<8x128xf32>
    %32 = vector.extract_strided_slice %0 {offsets = [0, 0, 0, 4], sizes = [1, 1, 1, 1], strides = [1, 1, 1, 1]} : vector<1x2x1x5xf32> to vector<1x1x1x1xf32>
    %33 = vector.shape_cast %32 : vector<1x1x1x1xf32> to vector<1x1xf32>
    %34 = vector.broadcast %33 : vector<1x1xf32> to vector<8x128xf32>
    %35 = arith.mulf %31, %34 : vector<8x128xf32>
    %36 = arith.addf %30, %35 : vector<8x128xf32>
    %37 = vector.extract_strided_slice %1 {offsets = [0, 0, 0, 0], sizes = [1, 1, 1, 1], strides = [1, 1, 1, 1]} : vector<1x2x1x1xf32> to vector<1x1x1x1xf32>
    %38 = vector.shape_cast %37 : vector<1x1x1x1xf32> to vector<1x1xf32>
    %39 = vector.broadcast %38 : vector<1x1xf32> to vector<8x128xf32>
    %40 = arith.addf %36, %39 : vector<8x128xf32>
    %c0_14 = arith.constant 0 : index
    %c0_15 = arith.constant 0 : index
    %c0_16 = arith.constant 0 : index
    %c0_17 = arith.constant 0 : index
    %41 = vector.load %arg5[%c0_14, %c0_15, %c0_16, %c0_17] : memref<1x2x8x128xf32, #tpu.memory_space<vmem>>, vector<1x1x8x128xf32>
    %42 = vector.shape_cast %41 : vector<1x1x8x128xf32> to vector<8x128xf32>
    %43 = vector.shape_cast %40 : vector<8x128xf32> to vector<1x1x8x128xf32>
    tpu.vector_store %arg5[%c0_14, %c0_15, %c0_16, %c0_17], %43 {strides = array<i32>} : memref<1x2x8x128xf32, #tpu.memory_space<vmem>>, vector<1x1x8x128xf32>,
    %cst_18 = arith.constant 0.000000e+00 : f32
    %44 = vector.broadcast %cst_18 : f32 to vector<8x128xf32>
    %45 = vector.extract_strided_slice %3 {offsets = [0, 0], sizes = [8, 128], strides = [1, 1]} : vector<10x128xf32> to vector<8x128xf32>
    %46 = vector.extract_strided_slice %0 {offsets = [0, 1, 0, 0], sizes = [1, 1, 1, 1], strides = [1, 1, 1, 1]} : vector<1x2x1x5xf32> to vector<1x1x1x1xf32>
    %47 = vector.shape_cast %46 : vector<1x1x1x1xf32> to vector<1x1xf32>
    %48 = vector.broadcast %47 : vector<1x1xf32> to vector<8x128xf32>
    %49 = arith.mulf %45, %48 : vector<8x128xf32>
    %50 = arith.addf %44, %49 : vector<8x128xf32>
    %51 = vector.extract_strided_slice %5 {offsets = [0, 0], sizes = [8, 128], strides = [1, 1]} : vector<10x128xf32> to vector<8x128xf32>
    %52 = vector.extract_strided_slice %0 {offsets = [0, 1, 0, 1], sizes = [1, 1, 1, 1], strides = [1, 1, 1, 1]} : vector<1x2x1x5xf32> to vector<1x1x1x1xf32>
    %53 = vector.shape_cast %52 : vector<1x1x1x1xf32> to vector<1x1xf32>
    %54 = vector.broadcast %53 : vector<1x1xf32> to vector<8x128xf32>
    %55 = arith.mulf %51, %54 : vector<8x128xf32>
    %56 = arith.addf %50, %55 : vector<8x128xf32>
    %57 = vector.extract_strided_slice %3 {offsets = [1, 0], sizes = [8, 128], strides = [1, 1]} : vector<10x128xf32> to vector<8x128xf32>
    %58 = vector.extract_strided_slice %0 {offsets = [0, 1, 0, 2], sizes = [1, 1, 1, 1], strides = [1, 1, 1, 1]} : vector<1x2x1x5xf32> to vector<1x1x1x1xf32>
    %59 = vector.shape_cast %58 : vector<1x1x1x1xf32> to vector<1x1xf32>
    %60 = vector.broadcast %59 : vector<1x1xf32> to vector<8x128xf32>
    %61 = arith.mulf %57, %60 : vector<8x128xf32>
    %62 = arith.addf %56, %61 : vector<8x128xf32>
    %63 = vector.extract_strided_slice %5 {offsets = [1, 0], sizes = [8, 128], strides = [1, 1]} : vector<10x128xf32> to vector<8x128xf32>
    %64 = vector.extract_strided_slice %0 {offsets = [0, 1, 0, 3], sizes = [1, 1, 1, 1], strides = [1, 1, 1, 1]} : vector<1x2x1x5xf32> to vector<1x1x1x1xf32>
    %65 = vector.shape_cast %64 : vector<1x1x1x1xf32> to vector<1x1xf32>
    %66 = vector.broadcast %65 : vector<1x1xf32> to vector<8x128xf32>
    %67 = arith.mulf %63, %66 : vector<8x128xf32>
    %68 = arith.addf %62, %67 : vector<8x128xf32>
    %69 = vector.extract_strided_slice %3 {offsets = [2, 0], sizes = [8, 128], strides = [1, 1]} : vector<10x128xf32> to vector<8x128xf32>
    %70 = vector.extract_strided_slice %0 {offsets = [0, 1, 0, 4], sizes = [1, 1, 1, 1], strides = [1, 1, 1, 1]} : vector<1x2x1x5xf32> to vector<1x1x1x1xf32>
    %71 = vector.shape_cast %70 : vector<1x1x1x1xf32> to vector<1x1xf32>
    %72 = vector.broadcast %71 : vector<1x1xf32> to vector<8x128xf32>
    %73 = arith.mulf %69, %72 : vector<8x128xf32>
    %74 = arith.addf %68, %73 : vector<8x128xf32>
    %75 = vector.extract_strided_slice %1 {offsets = [0, 1, 0, 0], sizes = [1, 1, 1, 1], strides = [1, 1, 1, 1]} : vector<1x2x1x1xf32> to vector<1x1x1x1xf32>
    %76 = vector.shape_cast %75 : vector<1x1x1x1xf32> to vector<1x1xf32>
    %77 = vector.broadcast %76 : vector<1x1xf32> to vector<8x128xf32>
    %78 = arith.addf %74, %77 : vector<8x128xf32>
    %c0_19 = arith.constant 0 : index
    %c1_20 = arith.constant 1 : index
    %c0_21 = arith.constant 0 : index
    %c0_22 = arith.constant 0 : index
    %79 = vector.load %arg5[%c0_19, %c1_20, %c0_21, %c0_22] : memref<1x2x8x128xf32, #tpu.memory_space<vmem>>, vector<1x1x8x128xf32>
    %80 = vector.shape_cast %79 : vector<1x1x8x128xf32> to vector<8x128xf32>
    %81 = vector.shape_cast %78 : vector<8x128xf32> to vector<1x1x8x128xf32>
    tpu.vector_store %arg5[%c0_19, %c1_20, %c0_21, %c0_22], %81 {strides = array<i32>} : memref<1x2x8x128xf32, #tpu.memory_space<vmem>>, vector<1x1x8x128xf32>,
    return
  }
  func.func @transform_0(%arg0: i32, %arg1: i32) -> (i32, i32, i32, i32) {
    %c0_i32 = arith.constant 0 : i32
    %c0_i32_0 = arith.constant 0 : i32
    %c0_i32_1 = arith.constant 0 : i32
    return %arg0, %c0_i32, %c0_i32_0, %arg1 : i32, i32, i32, i32
  }
  func.func @transform_1(%arg0: i32, %arg1: i32) -> (i32, i32, i32, i32) {
    %c0_i32 = arith.constant 0 : i32
    %c0_i32_0 = arith.constant 0 : i32
    %c0_i32_1 = arith.constant 0 : i32
    %c0_i32_2 = arith.constant 0 : i32
    return %arg0, %c0_i32, %c0_i32_0, %c0_i32_1 : i32, i32, i32, i32
  }
  func.func @transform_2(%arg0: i32, %arg1: i32) -> (i32, i32, i32, i32) {
    %c0_i32 = arith.constant 0 : i32
    %c0_i32_0 = arith.constant 0 : i32
    %c0_i32_1 = arith.constant 0 : i32
    %c0_i32_2 = arith.constant 0 : i32
    return %arg0, %c0_i32, %c0_i32_0, %c0_i32_1 : i32, i32, i32, i32
  }
  func.func @transform_3(%arg0: i32, %arg1: i32) -> (i32, i32, i32, i32) {
    %c0_i32 = arith.constant 0 : i32
    %c0_i32_0 = arith.constant 0 : i32
    %c0_i32_1 = arith.constant 0 : i32
    return %arg0, %c0_i32, %c0_i32_0, %arg1 : i32, i32, i32, i32
  }
}

</mosaic_0001>

<llo_original>
// kernel: inception_block.1
$region0: #{inception_block.1}
  #allocation0 [shape = 'u32[]', space=smem, size = 0x4, offset = 0x4, fixed_abs, tag = 'smem constant byte address 0x4 - core index']
  #allocation1 [shape = 'u32[72,128]{1,0:T(1,128)}', space=vmem, size = 0x9000, scoped, tag = 'internal scratch']
  %s0 = inlined_call_operand.vmem [shape: f32[4,2,10,128], index: 0, kind: input, shape index: {}]
  %s1 = inlined_call_operand.vmem [shape: f32[4,2,1,5], index: 1, kind: input, shape index: {}]
  %s2 = inlined_call_operand.vmem [shape: f32[4,2,1,1], index: 2, kind: input, shape index: {}]
  %s3 = inlined_call_operand.vmem [shape: f32[4,2,8,128], index: 3, kind: output, shape index: {}]
  %s4 = sld [smem:[#allocation0]]
  $region45: #{inception_block.1} parent=0
    _
  %s6 = ssub.s32 1, %s4
  %s7 = scalar_select 0, %s6, %s4
  loop: start=0, step=1, limit=6
  $region2: #{inception_block.1} parent=0 // loop_pre_header
    _
  $region3: #{inception_block.1} parent=0 // loop_header
    %s9 = sphi 0, %s13
    %p10 = scmp.ge.s32.totalorder %s9, 6
    %s16 = sphi 0, %s28
    %s17 = sphi 0, %s24
    %s18 = sphi 0, %s16
    %s19 = sphi 0, %s17
    %s20 = sphi 0, %s18
    %s21 = sphi 0, %s19
    %s33 = sphi 0, %s35
    %s36 = sphi 0, %s33
    %s37 = sphi 0, %s36
    %s53 = sphi 0, %s37
    %s59 = sphi 0, %s61
    %s62 = sphi 0, %s59
    %s63 = sphi 0, %s62
    %s79 = sphi 0, %s63
    %s85 = sphi 0, %s87
    %s88 = sphi 0, %s85
    %s89 = sphi 0, %s88
    %s105 = sphi 0, %s89
    %s113 = sphi 0, %s115
    %s116 = sphi 0, %s113
    %s117 = sphi 0, %s116
    %s133 = sphi 0, %s117
  $region4: #{inception_block.1} parent=0 // loop_header_branch
    %12 = sbr.rel (%p10) target = $region8
  $region5: #{inception_block.1} parent=0 // loop_body
    %s14 = ssub.s32 %s9, 1
    %s15 = ssub.s32 %s9, 2
    %s22 = sadd.s32 1, %s17
    %p23 = scmp.ge.s32.totalorder %s22, 1
    %s24 = scalar_select %p23, 0, %s22
    %s25 = sadd.s32 1, %s16
    %s26 = scalar_select %p23, %s25, %s16
    %p27 = scmp.ge.s32.totalorder %s26, 4
    %s28 = scalar_select %p27, 0, %s26
    %s29 = ssub.s32 %s16, %s28
    %s30 = ssub.s32 %s17, %s24
    %s31 = sor.u32 %s29, %s30
    %p32 = scmp.eq.s32.totalorder %s31, 0
    %s34 = sadd.s32 %s33, 1
    %s35 = scalar_select %p32, %s33, %s34
    %p38 = pneg %p32
    %p39 = scmp.eq.s32.totalorder %s9, 3
    %p40 = por %p38, %p39
    %p41 = scmp.ne.s32.totalorder %s33, %s36
    %p42 = scmp.eq.s32.totalorder %s9, 0
    %p43 = por %p41, %p42
    %p44 = scmp.ne.s32.totalorder %s33, %s36
    %p45 = scmp.eq.s32.totalorder %s14, 3
    %p46 = por %p44, %p45
    %p47 = scmp.ne.s32.totalorder %s36, %s37
    %p48 = scmp.eq.s32.totalorder %s14, 0
    %p49 = por %p47, %p48
    %p50 = scmp.ne.s32.totalorder %s36, %s37
    %p51 = scmp.eq.s32.totalorder %s15, 3
    %p52 = por %p50, %p51
    %p54 = scmp.ne.s32.totalorder %s37, %s53
    %p55 = scmp.eq.s32.totalorder %s15, 0
    %p56 = por %p54, %p55
    %s57 = ssub.s32 %s16, %s28
    %p58 = scmp.eq.s32.totalorder %s57, 0
    %s60 = sadd.s32 %s59, 1
    %s61 = scalar_select %p58, %s59, %s60
    %p64 = pneg %p58
    %p65 = scmp.eq.s32.totalorder %s9, 3
    %p66 = por %p64, %p65
    %p67 = scmp.ne.s32.totalorder %s59, %s62
    %p68 = scmp.eq.s32.totalorder %s9, 0
    %p69 = por %p67, %p68
    %p70 = scmp.ne.s32.totalorder %s59, %s62
    %p71 = scmp.eq.s32.totalorder %s14, 3
    %p72 = por %p70, %p71
    %p73 = scmp.ne.s32.totalorder %s62, %s63
    %p74 = scmp.eq.s32.totalorder %s14, 0
    %p75 = por %p73, %p74
    %p76 = scmp.ne.s32.totalorder %s62, %s63
    %p77 = scmp.eq.s32.totalorder %s15, 3
    %p78 = por %p76, %p77
    %p80 = scmp.ne.s32.totalorder %s63, %s79
    %p81 = scmp.eq.s32.totalorder %s15, 0
    %p82 = por %p80, %p81
    %s83 = ssub.s32 %s16, %s28
    %p84 = scmp.eq.s32.totalorder %s83, 0
    %s86 = sadd.s32 %s85, 1
    %s87 = scalar_select %p84, %s85, %s86
    %p90 = pneg %p84
    %p91 = scmp.eq.s32.totalorder %s9, 3
    %p92 = por %p90, %p91
    %p93 = scmp.ne.s32.totalorder %s85, %s88
    %p94 = scmp.eq.s32.totalorder %s9, 0
    %p95 = por %p93, %p94
    %p96 = scmp.ne.s32.totalorder %s85, %s88
    %p97 = scmp.eq.s32.totalorder %s14, 3
    %p98 = por %p96, %p97
    %p99 = scmp.ne.s32.totalorder %s88, %s89
    %p100 = scmp.eq.s32.totalorder %s14, 0
    %p101 = por %p99, %p100
    %p102 = scmp.ne.s32.totalorder %s88, %s89
    %p103 = scmp.eq.s32.totalorder %s15, 3
    %p104 = por %p102, %p103
    %p106 = scmp.ne.s32.totalorder %s89, %s105
    %p107 = scmp.eq.s32.totalorder %s15, 0
    %p108 = por %p106, %p107
    %s109 = ssub.s32 %s16, %s28
    %s110 = ssub.s32 %s17, %s24
    %s111 = sor.u32 %s109, %s110
    %p112 = scmp.eq.s32.totalorder %s111, 0
    %s114 = sadd.s32 %s113, 1
    %s115 = scalar_select %p112, %s113, %s114
    %p118 = pneg %p112
    %p119 = scmp.eq.s32.totalorder %s9, 3
    %p120 = por %p118, %p119
    %p121 = scmp.ne.s32.totalorder %s113, %s116
    %p122 = scmp.eq.s32.totalorder %s9, 0
    %p123 = por %p121, %p122
    %p124 = scmp.ne.s32.totalorder %s113, %s116
    %p125 = scmp.eq.s32.totalorder %s14, 3
    %p126 = por %p124, %p125
    %p127 = scmp.ne.s32.totalorder %s116, %s117
    %p128 = scmp.eq.s32.totalorder %s14, 0
    %p129 = por %p127, %p128
    %p130 = scmp.ne.s32.totalorder %s116, %s117
    %p131 = scmp.eq.s32.totalorder %s15, 3
    %p132 = por %p130, %p131
    %p134 = scmp.ne.s32.totalorder %s117, %s133
    %p135 = scmp.eq.s32.totalorder %s15, 0
    %p136 = por %p134, %p135
    %p137 = scmp.le.s32.totalorder 1, %s9
    %p138 = scmp.lt.s32.totalorder %s9, 5
    %p139 = pnand %p137, %p138
    %p140 = pneg %p139
    // Predicated region
    $region9: #{inception_block.1} parent=5 // pred_check
      _
    $region10: #{inception_block.1} parent=5 // pred_check_branch
      %142 = sbr.rel (%p139) target = $region12
    $region11: #{inception_block.1} parent=5 // pred_region
      %s143 = ssub.s32 %s9, 1
    $region12: #{inception_block.1} parent=5 // pred_fallthru
      _
    %p144 = scmp.lt.s32.totalorder %s9, 4
    // Predicated region
    $region13: #{inception_block.1} parent=5 // pred_check
      %p145 = pneg %p144
    $region14: #{inception_block.1} parent=5 // pred_check_branch
      %147 = sbr.rel (%p145) target = $region16
    $region15: #{inception_block.1} parent=5 // pred_region
      // Predicated region
      $region17: #{inception_block.1} parent=15 // pred_check
        %p148 = pneg %p43
      $region18: #{inception_block.1} parent=15 // pred_check_branch
        %150 = sbr.rel (%p148) target = $region20
      $region19: #{inception_block.1} parent=15 // pred_region
        %p151 = scmp.lt.s32.totalorder %s16, 3
        %s152 = scalar_select %p151, %s16, 3
        %p153 = scmp.lt.s32.totalorder %s17, 0
        %s154 = scalar_select %p153, %s17, 0
        %s155 = smul.addr %s152, 4
        %s156 = sadd.s32 %s154, %s155
        %s157 = smul.addr %s156, 8
        %s158 = scalar_lea.vmem %s0, %s157
      $region20: #{inception_block.1} parent=15 // pred_fallthru
        _
      // Predicated region
      $region21: #{inception_block.1} parent=15 // pred_check
        %p159 = pneg %p69
      $region22: #{inception_block.1} parent=15 // pred_check_branch
        %161 = sbr.rel (%p159) target = $region24
      $region23: #{inception_block.1} parent=15 // pred_region
        %p162 = scmp.lt.s32.totalorder %s16, 3
        %s163 = scalar_select %p162, %s16, 3
        %s164 = smul.addr %s163, 2
        %s165 = scalar_lea.vmem %s1, %s164
      $region24: #{inception_block.1} parent=15 // pred_fallthru
        _
      // Predicated region
      $region25: #{inception_block.1} parent=15 // pred_check
        %p166 = pneg %p95
      $region26: #{inception_block.1} parent=15 // pred_check_branch
        %168 = sbr.rel (%p166) target = $region28
      $region27: #{inception_block.1} parent=15 // pred_region
        %p169 = scmp.lt.s32.totalorder %s16, 3
        %s170 = scalar_select %p169, %s16, 3
        %s171 = smul.addr %s170, 2
        %s172 = scalar_lea.vmem %s2, %s171
      $region28: #{inception_block.1} parent=15 // pred_fallthru
        _
    $region16: #{inception_block.1} parent=5 // pred_fallthru
      _
    %p173 = scmp.le.s32.totalorder 1, %s9
    %p174 = scmp.lt.s32.totalorder %s9, 5
    %p175 = pnand %p173, %p174
    %p176 = pneg %p175
    // Predicated region
    $region29: #{inception_block.1} parent=5 // pred_check
      _
    $region30: #{inception_block.1} parent=5 // pred_check_branch
      %178 = sbr.rel (%p175) target = $region32
    $region31: #{inception_block.1} parent=5 // pred_region
      %s179 = ssub.s32 %s9, 1
      %p180 = scmp.lt.s32.totalorder %s18, 3
      %s181 = scalar_select %p180, %s18, 3
      %p182 = scmp.lt.s32.totalorder %s19, 0
      %s183 = scalar_select %p182, %s19, 0
      %s184 = smul.addr %s181, 4
      %s185 = sadd.s32 %s183, %s184
      %s186 = smul.addr %s185, 8
      %s187 = scalar_lea.vmem %s0, %s186
      %p188 = pneg %p49
      %p189 = pneg %p46
      %p190 = scmp.lt.s32.totalorder %s18, 3
      %s191 = scalar_select %p190, %s18, 3
      %s192 = smul.addr %s191, 2
      %s193 = scalar_lea.vmem %s1, %s192
      %p194 = pneg %p75
      %p195 = pneg %p72
      %p196 = scmp.lt.s32.totalorder %s18, 3
      %s197 = scalar_select %p196, %s18, 3
      %s198 = smul.addr %s197, 2
      %s199 = scalar_lea.vmem %s2, %s198
      %p200 = pneg %p101
      %p201 = pneg %p98
      %p202 = pneg %p129
      %p203 = pneg %p126
      %p204 = scmp.lt.s32.totalorder %s18, 3
      %s205 = scalar_select %p204, %s18, 3
      %p206 = scmp.lt.s32.totalorder %s19, 0
      %s207 = scalar_select %p206, %s19, 0
      %s208 = smul.addr %s205, 2
      %s209 = sadd.s32 %s207, %s208
      %s210 = smul.addr %s209, 8
      %s211 = scalar_lea.vmem %s3, %s210
      %p212 = scmp.lt.s32.totalorder %s18, 3
      %s213 = scalar_select %p212, %s18, 3
      %p214 = scmp.lt.s32.totalorder %s19, 0
      %s215 = scalar_select %p214, %s19, 0
      %s216 = smul.addr %s213, 4
      %s217 = sadd.s32 %s215, %s216
      %s218 = smul.addr %s217, 8
      %s219 = scalar_lea.vmem %s0, %s218
      %p220 = scmp.lt.s32.totalorder %s18, 3
      %s221 = scalar_select %p220, %s18, 3
      %s222 = smul.addr %s221, 2
      %s223 = scalar_lea.vmem %s1, %s222
      %p224 = scmp.lt.s32.totalorder %s18, 3
      %s225 = scalar_select %p224, %s18, 3
      %s226 = smul.addr %s225, 2
      %s227 = scalar_lea.vmem %s2, %s226
      %p228 = scmp.lt.s32.totalorder %s18, 3
      %s229 = scalar_select %p228, %s18, 3
      %p230 = scmp.lt.s32.totalorder %s19, 0
      %s231 = scalar_select %p230, %s19, 0
      %s232 = smul.addr %s229, 2
      %s233 = sadd.s32 %s231, %s232
      %s234 = smul.addr %s233, 8
      %s235 = scalar_lea.vmem %s3, %s234
      %v236 = vld [vmem:[%s223] sm:$0x1]
      %v237 = vld [vmem:[%s223 + $0x1] sm:$0x1]
      %v238 = vld [vmem:[%s227] sm:$0x1]
      %v239 = vld [vmem:[%s227 + $0x1] sm:$0x1]
      %v240 = vld [vmem:[%s219] sm:$0xff]
      %v241 = vld [vmem:[%s219 + $0x8] sm:$0x3]
      %s242 = scalar_lea.vmem %s219, 16
      %v243 = vld [vmem:[%s242] sm:$0xff]
      %v244 = vld [vmem:[%s242 + $0x8] sm:$0x3]
      %v246 = vperm.slane %v236, 0
      %247 = vset.pattern.permute.xlu0 0
      %248 = vperm.xlu0 %247, %v246
      %v249 = vpop.permute.xlu0 %248
      %v251 = vmul.f32 %v240, %v249
      %v252 = vadd.f32 %v251, 0.0
      %253 = vset.pattern.permute.xlu0 1
      %254 = vperm.xlu0 %253, %v246
      %v255 = vpop.permute.xlu0 %254
      %v257 = vmul.f32 %v243, %v255
      %v258 = vadd.f32 %v252, %v257
      %259 = vset.pattern.permute.xlu0 2
      %260 = vperm.xlu0 %259, %v246
      %v261 = vpop.permute.xlu0 %260
      %v263 = vmul.f32 %v240, %v261
      %v264 = vmul.f32 %v241, %v261
      %vm267 = vcmask 1046528
      %v268 = vrot.slane %v263, 1
      %v269 = vrot.slane %v264, 1
      %v270 = vsel %vm267, %v268, %v269
      %v272 = vadd.f32 %v258, %v270
      %273 = vset.pattern.permute.xlu0 3
      %274 = vperm.xlu0 %273, %v246
      %v275 = vpop.permute.xlu0 %274
      %v277 = vmul.f32 %v243, %v275
      %v278 = vmul.f32 %v244, %v275
      %v281 = vrot.slane %v277, 1
      %v282 = vrot.slane %v278, 1
      %v283 = vsel %vm267, %v281, %v282
      %v285 = vadd.f32 %v272, %v283
      %286 = vset.pattern.permute.xlu0 4
      %287 = vperm.xlu0 %286, %v246
      %v288 = vpop.permute.xlu0 %287
      %v290 = vmul.f32 %v240, %v288
      %v291 = vmul.f32 %v241, %v288
      %vm294 = vcmask 1045504
      %v295 = vrot.slane %v290, 2
      %v296 = vrot.slane %v291, 2
      %v297 = vsel %vm294, %v295, %v296
      %v299 = vadd.f32 %v285, %v297
      %v301 = vperm.slane %v238, 0
      %302 = vset.pattern.permute.xlu0 0
      %303 = vperm.xlu0 %302, %v301
      %v304 = vpop.permute.xlu0 %303
      %v306 = vadd.f32 %v299, %v304
      %307 = vst [vmem:[%s235] sm:$0xff] %v306
      %v309 = vperm.slane %v237, 0
      %310 = vset.pattern.permute.xlu0 0
      %311 = vperm.xlu0 %310, %v309
      %v312 = vpop.permute.xlu0 %311
      %v314 = vmul.f32 %v240, %v312
      %v315 = vadd.f32 %v314, 0.0
      %316 = vset.pattern.permute.xlu0 1
      %317 = vperm.xlu0 %316, %v309
      %v318 = vpop.permute.xlu0 %317
      %v320 = vmul.f32 %v243, %v318
      %v321 = vadd.f32 %v315, %v320
      %322 = vset.pattern.permute.xlu0 2
      %323 = vperm.xlu0 %322, %v309
      %v324 = vpop.permute.xlu0 %323
      %v326 = vmul.f32 %v240, %v324
      %v327 = vmul.f32 %v241, %v324
      %v330 = vrot.slane %v326, 1
      %v331 = vrot.slane %v327, 1
      %v332 = vsel %vm267, %v330, %v331
      %v334 = vadd.f32 %v321, %v332
      %335 = vset.pattern.permute.xlu0 3
      %336 = vperm.xlu0 %335, %v309
      %v337 = vpop.permute.xlu0 %336
      %v339 = vmul.f32 %v243, %v337
      %v340 = vmul.f32 %v244, %v337
      %v343 = vrot.slane %v339, 1
      %v344 = vrot.slane %v340, 1
      %v345 = vsel %vm267, %v343, %v344
      %v347 = vadd.f32 %v334, %v345
      %348 = vset.pattern.permute.xlu0 4
      %349 = vperm.xlu0 %348, %v309
      %v350 = vpop.permute.xlu0 %349
      %v352 = vmul.f32 %v240, %v350
      %v353 = vmul.f32 %v241, %v350
      %v356 = vrot.slane %v352, 2
      %v357 = vrot.slane %v353, 2
      %v358 = vsel %vm294, %v356, %v357
      %v360 = vadd.f32 %v347, %v358
      %v362 = vperm.slane %v239, 0
      %363 = vset.pattern.permute.xlu0 0
      %364 = vperm.xlu0 %363, %v362
      %v365 = vpop.permute.xlu0 %364
      %v367 = vadd.f32 %v360, %v365
      %s368 = scalar_lea.vmem %s235, 8
      %369 = vst [vmem:[%s368] sm:$0xff] %v367
      %p370 = scmp.lt.s32.totalorder %s18, 3
      %s371 = scalar_select %p370, %s18, 3
      %p372 = scmp.lt.s32.totalorder %s19, 0
      %s373 = scalar_select %p372, %s19, 0
      %s374 = smul.addr %s371, 2
      %s375 = sadd.s32 %s373, %s374
      %s376 = smul.addr %s375, 8
      %s377 = scalar_lea.vmem %s3, %s376
      // Predicated region
      $region33: #{inception_block.1} parent=31 // pred_check
        %p378 = pneg %p126
      $region34: #{inception_block.1} parent=31 // pred_check_branch
        %380 = sbr.rel (%p378) target = $region36
      $region35: #{inception_block.1} parent=31 // pred_region
        _
      $region36: #{inception_block.1} parent=31 // pred_fallthru
        _
    $region32: #{inception_block.1} parent=5 // pred_fallthru
      _
    %p381 = scmp.le.s32.totalorder 2, %s9
    // Predicated region
    $region37: #{inception_block.1} parent=5 // pred_check
      %p382 = pneg %p381
    $region38: #{inception_block.1} parent=5 // pred_check_branch
      %384 = sbr.rel (%p382) target = $region40
    $region39: #{inception_block.1} parent=5 // pred_region
      %s385 = ssub.s32 %s9, 2
      // Predicated region
      $region41: #{inception_block.1} parent=39 // pred_check
        %p386 = pneg %p132
      $region42: #{inception_block.1} parent=39 // pred_check_branch
        %388 = sbr.rel (%p386) target = $region44
      $region43: #{inception_block.1} parent=39 // pred_region
        %p389 = scmp.lt.s32.totalorder %s20, 3
        %s390 = scalar_select %p389, %s20, 3
        %p391 = scmp.lt.s32.totalorder %s21, 0
        %s392 = scalar_select %p391, %s21, 0
        %s393 = smul.addr %s390, 2
        %s394 = sadd.s32 %s392, %s393
        %s395 = smul.addr %s394, 8
        %s396 = scalar_lea.vmem %s3, %s395
      $region44: #{inception_block.1} parent=39 // pred_fallthru
        _
    $region40: #{inception_block.1} parent=5 // pred_fallthru
      _
  $region6: #{inception_block.1} parent=0 // loop_footer
    %s13 = sadd.s32 1, %s9
  $region7: #{inception_block.1} parent=0 // loop_footer_branch
    %8 = sbr.rel target = $region3
  $region8: #{inception_block.1} parent=0 // loop_exit
    _

</llo_original>
